<compile_context>
chip_gen: v7x
topology: tpu7x:2x2x1
jax: 0.10.0
libtpu: 0.0.40
codegen_flags: <defaults>
</compile_context>

<pallas_src>
import jax
import jax.numpy as jnp
from jax.experimental import pallas as pl
from jax.experimental.pallas import tpu as pltpu

LANES = 128            # vreg lane width
MAX_TILE_ROWS = 2048   # 2048 x 128 f32 = 1 MiB per block buffer
TARGET_GRID_STEPS = 8  # keep the grid >= ~8 steps so v7x's 2 TCs both get work


def _round_up(a, b):
    return (a + b - 1) // b * b


def _mlp_kernel(params_ref, x_ref, o_ref):
    # params_ref (SMEM, 1-D f32[6]): [w1, b1, w2, b2, w3, b3]
    w1 = params_ref[0]
    b1 = params_ref[1]
    w2 = params_ref[2]
    b2 = params_ref[3]
    w3 = params_ref[4]
    b3 = params_ref[5]

    # sigmoid(z) = 0.5 + 0.5 * tanh(0.5 * z).  Fold every affine constant on
    # the scalar unit so the vector chain is tanh(x*a1+a0) -> tanh(.*c1+c0)
    # -> .*d1+d0  (2 EUP tanh + 3 mul + 3 add per element).
    a1 = 0.5 * w1
    a0 = 0.5 * b1
    c1 = 0.25 * w2                 # 0.5*w2 * 0.5 (from 0.5 + 0.5*t1)
    c0 = 0.25 * w2 + 0.5 * b2
    d1 = 0.5 * w3
    d0 = 0.5 * w3 + b3

    x = x_ref[...]                                  # (tile_r, 128) f32, VMEM
    t1 = jnp.tanh(x * a1 + a0)                      # sigmoid stage 1 (folded)
    t2 = jnp.tanh(t1 * c1 + c0)                     # sigmoid stage 2 (folded)
    o_ref[...] = t2 * d1 + d0                       # linear3 (folded)


def _forward_impl(x, params):
    """x: (N, 1) float32; params: (6,) float32 = [w1, b1, w2, b2, w3, b3]."""
    n, f = x.shape
    assert f == 1

    # ---- lane-dense repack: (N, 1) -> (rows_padded, 128) ----
    rows = pl.cdiv(n, LANES)
    rows_padded = _round_up(rows, 8)        # sublane alignment only (<=1023 elems slack)
    total = rows_padded * LANES

    flat = x.reshape(-1)
    if total != n:
        flat = jnp.pad(flat, (0, total - n))
    slab = flat.reshape(rows_padded, LANES)

    # Tile: up to 1 MiB, but keep several grid steps when the input is large
    # enough (pipeline depth + both v7x TensorCores).
    tile_r = min(
        MAX_TILE_ROWS,
        max(8, _round_up(pl.cdiv(rows_padded, TARGET_GRID_STEPS), 8)),
    )
    grid = (pl.cdiv(rows_padded, tile_r),)  # ragged last block clipped by Pallas

    out_slab = pl.pallas_call(
        _mlp_kernel,
        out_shape=jax.ShapeDtypeStruct((rows_padded, LANES), jnp.float32),
        grid=grid,
        in_specs=[
            pl.BlockSpec(memory_space=pltpu.MemorySpace.SMEM),   # flat scalar params
            pl.BlockSpec((tile_r, LANES), lambda i: (i, 0)),     # lane-dense tile
        ],
        out_specs=pl.BlockSpec((tile_r, LANES), lambda i: (i, 0)),
        compiler_params=pltpu.CompilerParams(
            dimension_semantics=("parallel",),
        ),
    )(params, slab)

    # ---- undo the repack (fused inside the same jitted program) ----
    return out_slab.reshape(-1)[:n].reshape(n, 1)


# Single XLA program: pad + reshape + kernel + slice are not dispatched eagerly.
linear_model_forward = jax.jit(_forward_impl)


def reference_forward(x, params):
    w1, b1, w2, b2, w3, b3 = params
    h = 1.0 / (1.0 + jnp.exp(-(x * w1 + b1)))
    h = 1.0 / (1.0 + jnp.exp(-(h * w2 + b2)))
    return h * w3 + b3


if __name__ == "__main__":
    key = jax.random.PRNGKey(0)
    kp, kx, kx2 = jax.random.split(key, 3)

    # Deterministic parameters (PyTorch Linear(1,1) x3 -> 6 scalars total).
    params = jax.random.uniform(kp, (6,), dtype=jnp.float32,
                                minval=-1.0, maxval=1.0)

    # Small batch consistent with the module: (N, 1) input.
    N = 8
    x = jax.random.normal(kx, (N, 1), dtype=jnp.float32)
    out = jax.block_until_ready(linear_model_forward(x, params))
    ref = reference_forward(x, params)
    assert out.shape == (N, 1)
    assert jnp.allclose(out, ref, atol=1e-6, rtol=1e-6)

    # Larger batch: exercises sublane padding, the ragged last grid block and
    # the multi-step pipelined grid.
    N2 = 70_000
    x2 = jax.random.normal(kx2, (N2, 1), dtype=jnp.float32)
    out2 = jax.block_until_ready(linear_model_forward(x2, params))
    ref2 = reference_forward(x2, params)
    assert out2.shape == (N2, 1)
    assert jnp.allclose(out2, ref2, atol=1e-6, rtol=1e-6)

    print("KERNEL_OK")
</pallas_src>

<mosaic_0001>
module attributes {stable_mosaic.version = 11 : i64} {
  func.func @_mlp_kernel(%arg0: i32, %arg1: memref<6xf32, #tpu.memory_space<smem>>, %arg2: memref<8x128xf32, #tpu.memory_space<vmem>>, %arg3: memref<8x128xf32, #tpu.memory_space<vmem>>) attributes {dimension_semantics = [#tpu.dimension_semantics<parallel>], iteration_bounds = array<i64: 1>, scalar_prefetch = 0 : i64, scratch_operands = 0 : i64, tpu.core_type = #tpu.core_type<tc>, window_params = [{transform_indices = @transform_0, window_bounds = array<i64: 6>}, {transform_indices = @transform_1, window_bounds = array<i64: 8, 128>}, {transform_indices = @transform_2, window_bounds = array<i64: 8, 128>}]} {
    %c0 = arith.constant 0 : index
    %0 = memref.load %arg1[%c0] : memref<6xf32, #tpu.memory_space<smem>>
    %c1 = arith.constant 1 : index
    %1 = memref.load %arg1[%c1] : memref<6xf32, #tpu.memory_space<smem>>
    %c2 = arith.constant 2 : index
    %2 = memref.load %arg1[%c2] : memref<6xf32, #tpu.memory_space<smem>>
    %c3 = arith.constant 3 : index
    %3 = memref.load %arg1[%c3] : memref<6xf32, #tpu.memory_space<smem>>
    %c4 = arith.constant 4 : index
    %4 = memref.load %arg1[%c4] : memref<6xf32, #tpu.memory_space<smem>>
    %c5 = arith.constant 5 : index
    %5 = memref.load %arg1[%c5] : memref<6xf32, #tpu.memory_space<smem>>
    %cst = arith.constant 5.000000e-01 : f32
    %6 = arith.mulf %cst, %0 : f32
    %cst_0 = arith.constant 5.000000e-01 : f32
    %7 = arith.mulf %cst_0, %1 : f32
    %cst_1 = arith.constant 2.500000e-01 : f32
    %8 = arith.mulf %cst_1, %2 : f32
    %cst_2 = arith.constant 2.500000e-01 : f32
    %9 = arith.mulf %cst_2, %2 : f32
    %cst_3 = arith.constant 5.000000e-01 : f32
    %10 = arith.mulf %cst_3, %3 : f32
    %11 = arith.addf %9, %10 : f32
    %cst_4 = arith.constant 5.000000e-01 : f32
    %12 = arith.mulf %cst_4, %4 : f32
    %cst_5 = arith.constant 5.000000e-01 : f32
    %13 = arith.mulf %cst_5, %4 : f32
    %14 = arith.addf %13, %5 : f32
    %c0_6 = arith.constant 0 : index
    %c0_7 = arith.constant 0 : index
    %15 = vector.load %arg2[%c0_6, %c0_7] : memref<8x128xf32, #tpu.memory_space<vmem>>, vector<8x128xf32>
    %16 = vector.broadcast %6 : f32 to vector<8x128xf32>
    %17 = arith.mulf %15, %16 : vector<8x128xf32>
    %18 = vector.broadcast %7 : f32 to vector<8x128xf32>
    %19 = arith.addf %17, %18 : vector<8x128xf32>
    %20 = math.tanh %19 : vector<8x128xf32>
    %21 = vector.broadcast %8 : f32 to vector<8x128xf32>
    %22 = arith.mulf %20, %21 : vector<8x128xf32>
    %23 = vector.broadcast %11 : f32 to vector<8x128xf32>
    %24 = arith.addf %22, %23 : vector<8x128xf32>
    %25 = math.tanh %24 : vector<8x128xf32>
    %26 = vector.broadcast %12 : f32 to vector<8x128xf32>
    %27 = arith.mulf %25, %26 : vector<8x128xf32>
    %28 = vector.broadcast %14 : f32 to vector<8x128xf32>
    %29 = arith.addf %27, %28 : vector<8x128xf32>
    %c0_8 = arith.constant 0 : index
    %c0_9 = arith.constant 0 : index
    %30 = vector.load %arg3[%c0_8, %c0_9] : memref<8x128xf32, #tpu.memory_space<vmem>>, vector<8x128xf32>
    tpu.vector_store %arg3[%c0_8, %c0_9], %29 {strides = array<i32>} : memref<8x128xf32, #tpu.memory_space<vmem>>, vector<8x128xf32>,
    return
  }
  func.func @transform_0(%arg0: i32) -> i32 {
    %c0_i32 = arith.constant 0 : i32
    %c0_i32_0 = arith.constant 0 : i32
    return %c0_i32 : i32
  }
  func.func @transform_1(%arg0: i32) -> (i32, i32) {
    %c0_i32 = arith.constant 0 : i32
    %c0_i32_0 = arith.constant 0 : i32
    return %arg0, %c0_i32 : i32, i32
  }
  func.func @transform_2(%arg0: i32) -> (i32, i32) {
    %c0_i32 = arith.constant 0 : i32
    %c0_i32_0 = arith.constant 0 : i32
    return %arg0, %c0_i32 : i32, i32
  }
}

</mosaic_0001>

<llo_original>
// kernel: _forward_impl.1
$region0: #{_forward_impl.1}
  #allocation0 [shape = 'u32[]', space=smem, size = 0x4, offset = 0x4, fixed_abs, tag = 'smem constant byte address 0x4 - core index']
  #allocation1 [shape = 'u32[144,128]{1,0:T(1,128)}', space=vmem, size = 0x12000, scoped, tag = 'internal scratch']
  %s0 = inlined_call_operand.vmem [shape: f32[6], index: 0, kind: input, shape index: {}]
  %s1 = inlined_call_operand.vmem [shape: f32[8,128], index: 1, kind: input, shape index: {}]
  %s2 = inlined_call_operand.vmem [shape: f32[8,128], index: 2, kind: output, shape index: {}]
  %s3 = sld [smem:[#allocation0]]
  $region22: #{_forward_impl.1} parent=0
    _
  %s5 = ssub.s32 1, %s3
  %s6 = scalar_select 0, %s5, %s3
  $region1: #{_forward_impl.1} parent=0
    #allocation2 [shape = 'u8[512]{0}', space=smem, size = 0x200, scoped, tag = 'input window, operand 0, single buffered']
    #allocation3 [shape = 's32[1]{0}', space=sflag, size = 0x4, scoped, tag = 'scoped memory for _forward_impl.1']
    %7 = vsyncpa [#allocation3], 0
    // Predicated region
    $region2: #{_forward_impl.1} parent=1 // pred_check
      _
    $region3: #{_forward_impl.1} parent=1 // pred_check_branch
      %9 = sbr.rel (0) target = $region5
    $region4: #{_forward_impl.1} parent=1 // pred_region
      %s11 = ssub.s32 16, 16
      %12 = vsyncadd [#allocation3], %s11
      %s14 = sshll.u32 %s0, 4
      %s15 = int_to_ptr.vmem [resolvable:$true] %s14
      %17 = dma.vmem_to_smem %s15, 16, [#allocation2], [#allocation3]
    $region5: #{_forward_impl.1} parent=1 // pred_fallthru
      _
    // Predicated region
    $region6: #{_forward_impl.1} parent=1 // pred_check
      _
    $region7: #{_forward_impl.1} parent=1 // pred_check_branch
      %19 = sbr.rel (0) target = $region9
    $region8: #{_forward_impl.1} parent=1 // pred_region
      _
    $region9: #{_forward_impl.1} parent=1 // pred_fallthru
      _
    // Predicated region
    $region10: #{_forward_impl.1} parent=1 // pred_check
      _
    $region11: #{_forward_impl.1} parent=1 // pred_check_branch
      %21 = sbr.rel (0) target = $region13
    $region12: #{_forward_impl.1} parent=1 // pred_region
      %22 = dma.done [#allocation3], 16
    $region13: #{_forward_impl.1} parent=1 // pred_fallthru
      _
    %23 = sfence
    %s24 = sld [smem:[#allocation2]]
    %s25 = sld [smem:[#allocation2 + $0x1]]
    %s26 = sld [smem:[#allocation2 + $0x2]]
    %s27 = sld [smem:[#allocation2 + $0x3]]
    %s28 = sld [smem:[#allocation2 + $0x4]]
    %s29 = sld [smem:[#allocation2 + $0x5]]
    %s30 = smul.f32 %s24, 0.5
    %s31 = smul.f32 %s25, 0.5
    %s32 = smul.f32 %s26, 0.25
    %s33 = smul.f32 %s27, 0.5
    %s34 = sadd.f32 %s32, %s33
    %s35 = smul.f32 %s28, 0.5
    %s36 = sadd.f32 %s35, %s29
    %v37 = vld [vmem:[%s1] sm:$0xff]
    %v38 = vstv %s30
    %v39 = vmul.f32 %v37, %v38
    %v40 = vstv %s31
    %v41 = vadd.f32 %v39, %v40
    %v42 = vtanh.pop %v41
    %v43 = vstv %s32
    %v44 = vmul.f32 %v42, %v43
    %v45 = vstv %s34
    %v46 = vadd.f32 %v44, %v45
    %v47 = vtanh.pop %v46
    %v48 = vstv %s35
    %v49 = vmul.f32 %v47, %v48
    %v50 = vstv %s36
    %v51 = vadd.f32 %v49, %v50
    %52 = vst [vmem:[%s2] sm:$0xff] %v51
    // Predicated region
    $region14: #{_forward_impl.1} parent=1 // pred_check
      _
    $region15: #{_forward_impl.1} parent=1 // pred_check_branch
      %54 = sbr.rel (0) target = $region17
    $region16: #{_forward_impl.1} parent=1 // pred_region
      _
    $region17: #{_forward_impl.1} parent=1 // pred_fallthru
      _
    // Predicated region
    $region18: #{_forward_impl.1} parent=1 // pred_check
      _
    $region19: #{_forward_impl.1} parent=1 // pred_check_branch
      %56 = sbr.rel (0) target = $region21
    $region20: #{_forward_impl.1} parent=1 // pred_region
      _
    $region21: #{_forward_impl.1} parent=1 // pred_fallthru
      _
    %57 = vsyncpa [#allocation3], 1

</llo_original>
